<compile_context>
chip_gen: v7x
topology: tpu7x:2x2x1
jax: 0.10.0
libtpu: 0.0.40
codegen_flags: <defaults>
</compile_context>

<pallas_src>
import functools

import jax
import jax.numpy as jnp
from jax.experimental import pallas as pl
from jax.experimental.pallas import tpu as pltpu


def _round_up(v: int, m: int) -> int:
    return (v + m - 1) // m * m


def _mlp_kernel(*refs, num_layers: int, relu_flags: tuple):
    """Fused MLP: all Linear(+ReLU) layers in one kernel, activations in VMEM.

    refs = (x_ref, w0_ref, b0_ref, w1_ref, b1_ref, ..., o_ref)
      x_ref : (tm, IN0p)   f32 VMEM
      wi_ref: (INp, OUTp)  bf16 VMEM  (weight stored as (IN, OUT), padded)
      bi_ref: (1,   OUTp)  f32 VMEM   (zero-padded bias)
      o_ref : (tm, OUTLp)  f32 VMEM
    """
    x_ref = refs[0]
    o_ref = refs[-1]
    params = refs[1:-1]

    h = x_ref[...]                          # f32 activations
    for i in range(num_layers):             # statically unrolled
        w_ref = params[2 * i]
        b_ref = params[2 * i + 1]
        # bf16 operands on the MXU, f32 accumulate (native rate on v5e/v6e/v7x).
        acc = jnp.dot(h.astype(w_ref.dtype), w_ref[...],
                      preferred_element_type=jnp.float32)
        acc = acc + b_ref[...]              # f32 epilogue: bias
        if relu_flags[i]:
            acc = jnp.maximum(acc, 0.0)     # f32 epilogue: ReLU
        h = acc
    o_ref[...] = h.astype(o_ref.dtype)


def _pick_batch_tiling(B: int, tm_max: int = 256):
    """Pad B to a multiple of 16 (bf16 sublane pack) and pick a batch tile so
    the single 'parallel' grid axis has extent >= 2 when possible (v7x 2 TCs)."""
    if B <= 16:
        Bp = _round_up(B, 16)
        return Bp, Bp
    tm = min(tm_max, _round_up((B + 1) // 2, 16))
    Bp = _round_up(B, tm)
    return Bp, tm


def mlp_forward(x, layers, out_features: int, *, tm_max: int = 256):
    """y = MLP(x) with all layers fused in one Pallas kernel.

    x      : (B, IN) float32
    layers : list of (w_t_padded_bf16 (INp,OUTp), b_padded_f32 (1,OUTp), relu)
    """
    B, IN = x.shape
    IN0p = layers[0][0].shape[0]
    OUTp_last = layers[-1][0].shape[1]
    assert IN <= IN0p, (IN, IN0p)

    Bp, tm = _pick_batch_tiling(B, tm_max)
    if (Bp, IN0p) != (B, IN):
        # Zero padding: padded features hit zero weight rows -> no effect.
        x = jnp.pad(x, ((0, Bp - B), (0, IN0p - IN)))

    num_layers = len(layers)
    relu_flags = tuple(l[2] for l in layers)

    in_specs = [pl.BlockSpec((tm, IN0p), lambda i: (i, 0))]
    flat_params = []
    weight_bytes = 0
    for (w, b, _) in layers:
        INp, OUTp = w.shape
        # Constant block index -> each weight/bias is DMA'd once and stays in VMEM.
        in_specs.append(pl.BlockSpec((INp, OUTp), lambda i: (0, 0)))
        in_specs.append(pl.BlockSpec((1, OUTp), lambda i: (0, 0)))
        flat_params += [w, b]
        weight_bytes += w.size * w.dtype.itemsize + b.size * b.dtype.itemsize

    # Rough VMEM budget: double-buffered x/out blocks + all params + per-layer
    # activation temporaries (f32 + bf16 copy).
    est = 2 * tm * IN0p * 4 + 2 * tm * OUTp_last * 4 + 2 * weight_bytes
    for (w, _, _) in layers:
        est += tm * w.shape[1] * 6
    if est > 48 * 1024 * 1024:
        # TODO(synk): per-layer tiled GEMM fallback for nets that overflow VMEM.
        raise ValueError(f"fused MLP VMEM estimate too large: {est} bytes")
    vmem_limit = None
    if est > 24 * 1024 * 1024:
        vmem_limit = min(int(est * 5 // 4), 48 * 1024 * 1024)  # v7x-safe cap

    out = pl.pallas_call(
        functools.partial(_mlp_kernel, num_layers=num_layers,
                          relu_flags=relu_flags),
        out_shape=jax.ShapeDtypeStruct((Bp, OUTp_last), jnp.float32),
        grid_spec=pltpu.PrefetchScalarGridSpec(
            num_scalar_prefetch=0,
            grid=(Bp // tm,),
            in_specs=in_specs,
            out_specs=pl.BlockSpec((tm, OUTp_last), lambda i: (i, 0)),
        ),
        compiler_params=pltpu.CompilerParams(
            dimension_semantics=("parallel",),
            vmem_limit_bytes=vmem_limit,
        ),
    )(x, *flat_params)

    if (Bp, OUTp_last) != (B, out_features):
        out = out[:B, :out_features]
    return out


def init_linear_params(key, in_features: int, out_features: int):
    """kaiming_uniform_(nonlinearity='relu') weight, zero bias.

    Returns the weight transposed to (IN, OUT), zero-padded to lane-dense
    sizes, and cast to bf16 ONCE (MXU operand dtype); bias padded, kept f32.
    """
    bound = (6.0 / in_features) ** 0.5  # gain*sqrt(3/fan_in), gain=sqrt(2)
    w = jax.random.uniform(
        key, (out_features, in_features), dtype=jnp.float32,
        minval=-bound, maxval=bound)
    b = jnp.zeros((out_features,), dtype=jnp.float32)

    inp = _round_up(in_features, 128)
    outp = _round_up(out_features, 128)
    w_t = jnp.pad(w.T, ((0, inp - in_features), (0, outp - out_features)))
    w_t = w_t.astype(jnp.bfloat16)                        # cast once at init
    b_p = jnp.pad(b, (0, outp - out_features)).reshape(1, outp)
    return w_t, b_p


class SupervisedANNPallas:
    """JAX/Pallas analogue of `Supervised_ANN`'s forward pass (MLP + ReLU)."""

    def __init__(self, neurons, key, sigma=0.0):
        self.id = "supervised"
        self.plotname = "supervised problem"
        self.dims = neurons
        self.neurons = neurons
        self.depth = len(neurons) - 1
        self.sigma = sigma  # NOTE: unused in forward (loss-time noise only)
        self.layers = []    # list of (w_t_padded_bf16, b_padded_f32, apply_relu)
        keys = jax.random.split(key, self.depth)
        for i in range(self.depth):
            w_t, b = init_linear_params(keys[i], neurons[i], neurons[i + 1])
            apply_relu = i < self.depth - 1   # ReLU after every Linear but last
            self.layers.append((w_t, b, apply_relu))
        # TODO(synk): loss / test_loss (target_fn + sqrt(sigma)*noise, MSE) and
        # UniformValueSampler are training utilities outside the forward pass.

    def forward(self, x):
        return mlp_forward(x, self.layers, self.neurons[-1])


if __name__ == "__main__":
    key = jax.random.PRNGKey(0)
    k_x, k_w = jax.random.split(key)

    # Small but TPU-aligned shapes: batch=64, neurons=(128, 256, 128)
    # -> two Linear layers with one fused ReLU between them.
    batch = 64
    neurons = (128, 256, 128)

    x = jax.random.normal(k_x, (batch, neurons[0]), dtype=jnp.float32)

    model = SupervisedANNPallas(neurons, k_w)
    y = jax.block_until_ready(model.forward(x))

    # Pure-JAX reference matching the kernel numerics (bf16 operands, f32 acc).
    ref = x
    for i, (w_t, b, relu) in enumerate(model.layers):
        w_log = w_t[:neurons[i], :neurons[i + 1]]
        b_log = b[0, :neurons[i + 1]]
        ref = jnp.dot(ref.astype(jnp.bfloat16), w_log,
                      preferred_element_type=jnp.float32) + b_log
        if relu:
            ref = jnp.maximum(ref, 0.0)

    assert y.shape == (batch, neurons[-1]), y.shape
    max_err = float(jnp.max(jnp.abs(y - ref)))
    assert jnp.allclose(y, ref, atol=1e-2, rtol=1e-2), max_err

    print("KERNEL_OK")
</pallas_src>

<mosaic_0001>
module attributes {stable_mosaic.version = 11 : i64} {
  func.func @_mlp_kernel(%arg0: i32, %arg1: memref<32x128xf32, #tpu.memory_space<vmem>>, %arg2: memref<128x256xbf16, #tpu.memory_space<vmem>>, %arg3: memref<1x256xf32, #tpu.memory_space<vmem>>, %arg4: memref<256x128xbf16, #tpu.memory_space<vmem>>, %arg5: memref<1x128xf32, #tpu.memory_space<vmem>>, %arg6: memref<32x128xf32, #tpu.memory_space<vmem>>) attributes {dimension_semantics = [#tpu.dimension_semantics<parallel>], iteration_bounds = array<i64: 2>, scalar_prefetch = 0 : i64, scratch_operands = 0 : i64, tpu.core_type = #tpu.core_type<tc>, window_params = [{transform_indices = @transform_0, window_bounds = array<i64: 32, 128>}, {pipeline_mode = #tpu.pipeline_mode<synchronous>, transform_indices = @transform_1, window_bounds = array<i64: 128, 256>}, {pipeline_mode = #tpu.pipeline_mode<synchronous>, transform_indices = @transform_2, window_bounds = array<i64: 1, 256>}, {pipeline_mode = #tpu.pipeline_mode<synchronous>, transform_indices = @transform_3, window_bounds = array<i64: 256, 128>}, {pipeline_mode = #tpu.pipeline_mode<synchronous>, transform_indices = @transform_4, window_bounds = array<i64: 1, 128>}, {transform_indices = @transform_5, window_bounds = array<i64: 32, 128>}]} {
    %c0 = arith.constant 0 : index
    %c0_0 = arith.constant 0 : index
    %0 = vector.load %arg1[%c0, %c0_0] : memref<32x128xf32, #tpu.memory_space<vmem>>, vector<32x128xf32>
    %1 = arith.truncf %0 : vector<32x128xf32> to vector<32x128xbf16>
    %c0_1 = arith.constant 0 : index
    %c0_2 = arith.constant 0 : index
    %2 = vector.load %arg2[%c0_1, %c0_2] : memref<128x256xbf16, #tpu.memory_space<vmem>>, vector<128x256xbf16>
    %cst = arith.constant dense<0.000000e+00> : vector<32x256xf32>
    %3 = tpu.matmul %1, %2, %cst {dimension_numbers = #tpu.dot_dimension_numbers<[1], [0], [0], [1], [0, 0, 1, 1], [], []>} : vector<32x128xbf16>, vector<128x256xbf16>, vector<32x256xf32> -> vector<32x256xf32>
    %c0_3 = arith.constant 0 : index
    %c0_4 = arith.constant 0 : index
    %4 = vector.load %arg3[%c0_3, %c0_4] : memref<1x256xf32, #tpu.memory_space<vmem>>, vector<1x256xf32>
    %5 = vector.broadcast %4 : vector<1x256xf32> to vector<32x256xf32>
    %6 = arith.addf %3, %5 : vector<32x256xf32>
    %cst_5 = arith.constant 0.000000e+00 : f32
    %7 = vector.broadcast %cst_5 : f32 to vector<32x256xf32>
    %8 = arith.maximumf %6, %7 : vector<32x256xf32>
    %9 = arith.truncf %8 : vector<32x256xf32> to vector<32x256xbf16>
    %c0_6 = arith.constant 0 : index
    %c0_7 = arith.constant 0 : index
    %10 = vector.load %arg4[%c0_6, %c0_7] : memref<256x128xbf16, #tpu.memory_space<vmem>>, vector<256x128xbf16>
    %cst_8 = arith.constant dense<0.000000e+00> : vector<32x128xf32>
    %11 = tpu.matmul %9, %10, %cst_8 {dimension_numbers = #tpu.dot_dimension_numbers<[1], [0], [0], [1], [0, 0, 1, 1], [], []>} : vector<32x256xbf16>, vector<256x128xbf16>, vector<32x128xf32> -> vector<32x128xf32>
    %c0_9 = arith.constant 0 : index
    %c0_10 = arith.constant 0 : index
    %12 = vector.load %arg5[%c0_9, %c0_10] : memref<1x128xf32, #tpu.memory_space<vmem>>, vector<1x128xf32>
    %13 = vector.broadcast %12 : vector<1x128xf32> to vector<32x128xf32>
    %14 = arith.addf %11, %13 : vector<32x128xf32>
    %c0_11 = arith.constant 0 : index
    %c0_12 = arith.constant 0 : index
    %15 = vector.load %arg6[%c0_11, %c0_12] : memref<32x128xf32, #tpu.memory_space<vmem>>, vector<32x128xf32>
    tpu.vector_store %arg6[%c0_11, %c0_12], %14 {strides = array<i32>} : memref<32x128xf32, #tpu.memory_space<vmem>>, vector<32x128xf32>,
    return
  }
  func.func @transform_0(%arg0: i32) -> (i32, i32) {
    %c0_i32 = arith.constant 0 : i32
    %c0_i32_0 = arith.constant 0 : i32
    return %arg0, %c0_i32 : i32, i32
  }
  func.func @transform_1(%arg0: i32) -> (i32, i32) {
    %c0_i32 = arith.constant 0 : i32
    %c0_i32_0 = arith.constant 0 : i32
    %c0_i32_1 = arith.constant 0 : i32
    return %c0_i32, %c0_i32_0 : i32, i32
  }
  func.func @transform_2(%arg0: i32) -> (i32, i32) {
    %c0_i32 = arith.constant 0 : i32
    %c0_i32_0 = arith.constant 0 : i32
    %c0_i32_1 = arith.constant 0 : i32
    return %c0_i32, %c0_i32_0 : i32, i32
  }
  func.func @transform_3(%arg0: i32) -> (i32, i32) {
    %c0_i32 = arith.constant 0 : i32
    %c0_i32_0 = arith.constant 0 : i32
    %c0_i32_1 = arith.constant 0 : i32
    return %c0_i32, %c0_i32_0 : i32, i32
  }
  func.func @transform_4(%arg0: i32) -> (i32, i32) {
    %c0_i32 = arith.constant 0 : i32
    %c0_i32_0 = arith.constant 0 : i32
    %c0_i32_1 = arith.constant 0 : i32
    return %c0_i32, %c0_i32_0 : i32, i32
  }
  func.func @transform_5(%arg0: i32) -> (i32, i32) {
    %c0_i32 = arith.constant 0 : i32
    %c0_i32_0 = arith.constant 0 : i32
    return %arg0, %c0_i32 : i32, i32
  }
}

</mosaic_0001>

<llo_original>
// kernel: tpu_custom_call.1
$region0: #{tpu_custom_call.1}
  #allocation0 [shape = 'u32[]', space=smem, size = 0x4, offset = 0x4, fixed_abs, tag = 'smem constant byte address 0x4 - core index']
  #allocation1 [shape = 'u32[144,128]{1,0:T(1,128)}', space=vmem, size = 0x12000, scoped, tag = 'internal scratch']
  %s0 = inlined_call_operand.hbm [shape: f32[64,128], index: 0, kind: input, shape index: {}]
  %s1 = inlined_call_operand.hbm [shape: bf16[128,256], index: 1, kind: input, shape index: {}]
  %s2 = inlined_call_operand.vmem [shape: f32[1,256], index: 2, kind: input, shape index: {}]
  %s3 = inlined_call_operand.hbm [shape: bf16[256,128], index: 3, kind: input, shape index: {}]
  %s4 = inlined_call_operand.vmem [shape: f32[1,128], index: 4, kind: input, shape index: {}]
  %s5 = inlined_call_operand.hbm [shape: f32[64,128], index: 5, kind: output, shape index: {}]
  %s6 = sld [smem:[#allocation0]]
  $region65: #{tpu_custom_call.1} parent=0
    _
  %s8 = ssub.s32 1, %s6
  %s9 = scalar_select 0, %s8, %s6
  $region1: #{tpu_custom_call.1} parent=0
    #allocation2 [shape = 'u8[32768]{0}', space=vmem, size = 0x8000, scoped, tag = 'input window, operand 0']
    #allocation3 [shape = 's32[2]{0}', space=sflag, size = 0x8, scoped, tag = 'scoped memory for tpu_custom_call.1']
    #allocation4 [shape = 's32[2]{0}', space=sflag, size = 0x8, scoped, tag = 'scoped memory for tpu_custom_call.1']
    #allocation5 [shape = 'u8[65536]{0}', space=vmem, size = 0x10000, scoped, tag = 'input window, operand 1, single buffered']
    #allocation6 [shape = 's32[1]{0}', space=sflag, size = 0x4, scoped, tag = 'scoped memory for tpu_custom_call.1']
    #allocation7 [shape = 'u8[65536]{0}', space=vmem, size = 0x10000, scoped, tag = 'input window, operand 3, single buffered']
    #allocation8 [shape = 'u8[32768]{0}', space=vmem, size = 0x8000, scoped, tag = 'output window, operand 0']
    %10 = vsyncpa [#allocation3], 0
    %s11 = scalar_lea.sflag [#allocation3], 1
    %12 = vsyncpa %s11, 0
    %13 = vsyncpa [#allocation6], 0
    %14 = vsyncpa [#allocation4], 0
    %s15 = scalar_lea.sflag [#allocation4], 1
    %16 = vsyncpa %s15, 0
    loop: start=0, step=1, limit=4
    $region2: #{tpu_custom_call.1} parent=1 // loop_pre_header
      _
    $region3: #{tpu_custom_call.1} parent=1 // loop_header
      %s18 = sphi 0, %s22
      %p19 = scmp.ge.s32.totalorder %s18, 4
      %s28 = sphi 0, %s30
      %s31 = sphi 0, %s28
      %s32 = sphi 0, %s31
      %s48 = sphi 0, %s32
      %s52 = sphi 0, %s52
      %s54 = sphi 0, %s52
      %s55 = sphi 0, %s54
      %s69 = sphi 0, %s55
      %s73 = sphi 0, %s73
      %s75 = sphi 0, %s73
      %s76 = sphi 0, %s75
      %s90 = sphi 0, %s76
      %s94 = sphi 0, %s94
      %s96 = sphi 0, %s94
      %s97 = sphi 0, %s96
      %s111 = sphi 0, %s97
      %s115 = sphi 0, %s115
      %s117 = sphi 0, %s115
      %s118 = sphi 0, %s117
      %s132 = sphi 0, %s118
      %s138 = sphi 0, %s140
      %s141 = sphi 0, %s138
      %s142 = sphi 0, %s141
      %s158 = sphi 0, %s142
    $region4: #{tpu_custom_call.1} parent=1 // loop_header_branch
      %21 = sbr.rel (%p19) target = $region8
    $region5: #{tpu_custom_call.1} parent=1 // loop_body
      %s23 = ssub.s32 %s18, 1
      %s24 = ssub.s32 %s18, 2
      %s25 = sadd.s32 %s18, 1
      %s26 = ssub.s32 %s18, %s25
      %p27 = scmp.eq.s32.totalorder %s26, 0
      %s29 = sadd.s32 %s28, 1
      %s30 = scalar_select %p27, %s28, %s29
      %p33 = pneg %p27
      %p34 = scmp.eq.s32.totalorder %s18, 1
      %p35 = por %p33, %p34
      %p36 = scmp.ne.s32.totalorder %s28, %s31
      %p37 = scmp.eq.s32.totalorder %s18, 0
      %p38 = por %p36, %p37
      %p39 = scmp.ne.s32.totalorder %s28, %s31
      %p40 = scmp.eq.s32.totalorder %s23, 1
      %p41 = por %p39, %p40
      %p42 = scmp.ne.s32.totalorder %s31, %s32
      %p43 = scmp.eq.s32.totalorder %s23, 0
      %p44 = por %p42, %p43
      %p45 = scmp.ne.s32.totalorder %s31, %s32
      %p46 = scmp.eq.s32.totalorder %s24, 1
      %p47 = por %p45, %p46
      %p49 = scmp.ne.s32.totalorder %s32, %s48
      %p50 = scmp.eq.s32.totalorder %s24, 0
      %p51 = por %p49, %p50
      %s53 = sadd.s32 %s52, 1
      %p56 = scmp.eq.s32.totalorder %s18, 1
      %p57 = scmp.ne.s32.totalorder %s52, %s54
      %p58 = scmp.eq.s32.totalorder %s18, 0
      %p59 = por %p57, %p58
      %p60 = scmp.ne.s32.totalorder %s52, %s54
      %p61 = scmp.eq.s32.totalorder %s23, 1
      %p62 = por %p60, %p61
      %p63 = scmp.ne.s32.totalorder %s54, %s55
      %p64 = scmp.eq.s32.totalorder %s23, 0
      %p65 = por %p63, %p64
      %p66 = scmp.ne.s32.totalorder %s54, %s55
      %p67 = scmp.eq.s32.totalorder %s24, 1
      %p68 = por %p66, %p67
      %p70 = scmp.ne.s32.totalorder %s55, %s69
      %p71 = scmp.eq.s32.totalorder %s24, 0
      %p72 = por %p70, %p71
      %s74 = sadd.s32 %s73, 1
      %p77 = scmp.eq.s32.totalorder %s18, 1
      %p78 = scmp.ne.s32.totalorder %s73, %s75
      %p79 = scmp.eq.s32.totalorder %s18, 0
      %p80 = por %p78, %p79
      %p81 = scmp.ne.s32.totalorder %s73, %s75
      %p82 = scmp.eq.s32.totalorder %s23, 1
      %p83 = por %p81, %p82
      %p84 = scmp.ne.s32.totalorder %s75, %s76
      %p85 = scmp.eq.s32.totalorder %s23, 0
      %p86 = por %p84, %p85
      %p87 = scmp.ne.s32.totalorder %s75, %s76
      %p88 = scmp.eq.s32.totalorder %s24, 1
      %p89 = por %p87, %p88
      %p91 = scmp.ne.s32.totalorder %s76, %s90
      %p92 = scmp.eq.s32.totalorder %s24, 0
      %p93 = por %p91, %p92
      %s95 = sadd.s32 %s94, 1
      %p98 = scmp.eq.s32.totalorder %s18, 1
      %p99 = scmp.ne.s32.totalorder %s94, %s96
      %p100 = scmp.eq.s32.totalorder %s18, 0
      %p101 = por %p99, %p100
      %p102 = scmp.ne.s32.totalorder %s94, %s96
      %p103 = scmp.eq.s32.totalorder %s23, 1
      %p104 = por %p102, %p103
      %p105 = scmp.ne.s32.totalorder %s96, %s97
      %p106 = scmp.eq.s32.totalorder %s23, 0
      %p107 = por %p105, %p106
      %p108 = scmp.ne.s32.totalorder %s96, %s97
      %p109 = scmp.eq.s32.totalorder %s24, 1
      %p110 = por %p108, %p109
      %p112 = scmp.ne.s32.totalorder %s97, %s111
      %p113 = scmp.eq.s32.totalorder %s24, 0
      %p114 = por %p112, %p113
      %s116 = sadd.s32 %s115, 1
      %p119 = scmp.eq.s32.totalorder %s18, 1
      %p120 = scmp.ne.s32.totalorder %s115, %s117
      %p121 = scmp.eq.s32.totalorder %s18, 0
      %p122 = por %p120, %p121
      %p123 = scmp.ne.s32.totalorder %s115, %s117
      %p124 = scmp.eq.s32.totalorder %s23, 1
      %p125 = por %p123, %p124
      %p126 = scmp.ne.s32.totalorder %s117, %s118
      %p127 = scmp.eq.s32.totalorder %s23, 0
      %p128 = por %p126, %p127
      %p129 = scmp.ne.s32.totalorder %s117, %s118
      %p130 = scmp.eq.s32.totalorder %s24, 1
      %p131 = por %p129, %p130
      %p133 = scmp.ne.s32.totalorder %s118, %s132
      %p134 = scmp.eq.s32.totalorder %s24, 0
      %p135 = por %p133, %p134
      %s136 = ssub.s32 %s18, %s25
      %p137 = scmp.eq.s32.totalorder %s136, 0
      %s139 = sadd.s32 %s138, 1
      %s140 = scalar_select %p137, %s138, %s139
      %p143 = pneg %p137
      %p144 = scmp.eq.s32.totalorder %s18, 1
      %p145 = por %p143, %p144
      %p146 = scmp.ne.s32.totalorder %s138, %s141
      %p147 = scmp.eq.s32.totalorder %s18, 0
      %p148 = por %p146, %p147
      %p149 = scmp.ne.s32.totalorder %s138, %s141
      %p150 = scmp.eq.s32.totalorder %s23, 1
      %p151 = por %p149, %p150
      %p152 = scmp.ne.s32.totalorder %s141, %s142
      %p153 = scmp.eq.s32.totalorder %s23, 0
      %p154 = por %p152, %p153
      %p155 = scmp.ne.s32.totalorder %s141, %s142
      %p156 = scmp.eq.s32.totalorder %s24, 1
      %p157 = por %p155, %p156
      %p159 = scmp.ne.s32.totalorder %s142, %s158
      %p160 = scmp.eq.s32.totalorder %s24, 0
      %p161 = por %p159, %p160
      %p162 = scmp.le.s32.totalorder 1, %s18
      %p163 = scmp.lt.s32.totalorder %s18, 3
      %p164 = pnand %p162, %p163
      %p165 = pneg %p164
      // Predicated region
      $region9: #{tpu_custom_call.1} parent=5 // pred_check
        _
      $region10: #{tpu_custom_call.1} parent=5 // pred_check_branch
        %167 = sbr.rel (%p164) target = $region12
      $region11: #{tpu_custom_call.1} parent=5 // pred_region
        %s168 = ssub.s32 %s18, 1
        // Predicated region
        $region13: #{tpu_custom_call.1} parent=11 // pred_check
          %p169 = pneg %p65
        $region14: #{tpu_custom_call.1} parent=11 // pred_check_branch
          %171 = sbr.rel (%p169) target = $region16
        $region15: #{tpu_custom_call.1} parent=11 // pred_region
          %s173 = ssub.s32 2048, 2048
          %174 = vsyncadd [#allocation6], %s173
          %s175 = sshll.u32 [#allocation5], 4
          %s176 = int_to_ptr.vmem [resolvable:$true] %s175
          %181 = dma.hbm_to_vmem [thread:$0]  %s1, 2048, %s176, [#allocation6], 128, 128, 8
        $region16: #{tpu_custom_call.1} parent=11 // pred_fallthru
          _
        // Predicated region
        $region17: #{tpu_custom_call.1} parent=11 // pred_check
          %p182 = pneg %p86
        $region18: #{tpu_custom_call.1} parent=11 // pred_check_branch
          %184 = sbr.rel (%p182) target = $region20
        $region19: #{tpu_custom_call.1} parent=11 // pred_region
          _
        $region20: #{tpu_custom_call.1} parent=11 // pred_fallthru
          _
        // Predicated region
        $region21: #{tpu_custom_call.1} parent=11 // pred_check
          %p185 = pneg %p107
        $region22: #{tpu_custom_call.1} parent=11 // pred_check_branch
          %187 = sbr.rel (%p185) target = $region24
        $region23: #{tpu_custom_call.1} parent=11 // pred_region
          %s189 = ssub.s32 2048, 2048
          %190 = vsyncadd [#allocation6], %s189
          %s191 = sshll.u32 [#allocation7], 4
          %s192 = int_to_ptr.vmem [resolvable:$true] %s191
          %197 = dma.hbm_to_vmem [thread:$0]  %s3, 2048, %s192, [#allocation6], 64, 64, 4
        $region24: #{tpu_custom_call.1} parent=11 // pred_fallthru
          _
        // Predicated region
        $region25: #{tpu_custom_call.1} parent=11 // pred_check
          %p198 = pneg %p128
        $region26: #{tpu_custom_call.1} parent=11 // pred_check_branch
          %200 = sbr.rel (%p198) target = $region28
        $region27: #{tpu_custom_call.1} parent=11 // pred_region
          _
        $region28: #{tpu_custom_call.1} parent=11 // pred_fallthru
          _
      $region12: #{tpu_custom_call.1} parent=5 // pred_fallthru
        _
      %p201 = scmp.lt.s32.totalorder %s18, 2
      // Predicated region
      $region29: #{tpu_custom_call.1} parent=5 // pred_check
        %p202 = pneg %p201
      $region30: #{tpu_custom_call.1} parent=5 // pred_check_branch
        %204 = sbr.rel (%p202) target = $region32
      $region31: #{tpu_custom_call.1} parent=5 // pred_region
        // Predicated region
        $region33: #{tpu_custom_call.1} parent=31 // pred_check
          %p205 = pneg %p38
        $region34: #{tpu_custom_call.1} parent=31 // pred_check_branch
          %207 = sbr.rel (%p205) target = $region36
        $region35: #{tpu_custom_call.1} parent=31 // pred_region
          %s208 = sand.u32 %s28, 1
          %s209 = scalar_lea.sflag [#allocation3], %s208
          %s210 = sand.u32 %s28, 1
          %s211 = smul.addr %s210, 32
          %s212 = scalar_lea.vmem [#allocation2], %s211
          %s213 = smul.u32 4, %s18
          %s215 = ssub.s32 512, 512
          %216 = vsyncadd %s209, %s215
          %s217 = smul.addr %s213, 128
          %s218 = scalar_lea.hbm %s0, %s217
          %s219 = sshll.u32 %s212, 4
          %s220 = int_to_ptr.vmem [resolvable:$true] %s219
          %225 = dma.hbm_to_vmem [thread:$0]  %s218, 512, %s220, %s209, 128, 128, 8
        $region36: #{tpu_custom_call.1} parent=31 // pred_fallthru
          _
      $region32: #{tpu_custom_call.1} parent=5 // pred_fallthru
        _
      %p226 = scmp.le.s32.totalorder 1, %s18
      %p227 = scmp.lt.s32.totalorder %s18, 3
      %p228 = pnand %p226, %p227
      %p229 = pneg %p228
      // Predicated region
      $region37: #{tpu_custom_call.1} parent=5 // pred_check
        _
      $region38: #{tpu_custom_call.1} parent=5 // pred_check_branch
        %231 = sbr.rel (%p228) target = $region40
      $region39: #{tpu_custom_call.1} parent=5 // pred_region
        %s232 = ssub.s32 %s18, 1
        %s233 = sand.u32 %s31, 1
        %s234 = scalar_lea.sflag [#allocation3], %s233
        %s235 = sand.u32 %s31, 1
        %s236 = smul.addr %s235, 32
        %s237 = scalar_lea.vmem [#allocation2], %s236
        // Predicated region
        $region41: #{tpu_custom_call.1} parent=39 // pred_check
          %p238 = pneg %p44
        $region42: #{tpu_custom_call.1} parent=39 // pred_check_branch
          %240 = sbr.rel (%p238) target = $region44
        $region43: #{tpu_custom_call.1} parent=39 // pred_region
          %241 = dma.done %s234, 512
        $region44: #{tpu_custom_call.1} parent=39 // pred_fallthru
          _
        // Predicated region
        $region45: #{tpu_custom_call.1} parent=39 // pred_check
          %p242 = pneg %p65
        $region46: #{tpu_custom_call.1} parent=39 // pred_check_branch
          %244 = sbr.rel (%p242) target = $region48
        $region47: #{tpu_custom_call.1} parent=39 // pred_region
          %245 = dma.done [#allocation6], 2048
        $region48: #{tpu_custom_call.1} parent=39 // pred_fallthru
          _
        // Predicated region
        $region49: #{tpu_custom_call.1} parent=39 // pred_check
          %p246 = pneg %p107
        $region50: #{tpu_custom_call.1} parent=39 // pred_check_branch
          %248 = sbr.rel (%p246) target = $region52
        $region51: #{tpu_custom_call.1} parent=39 // pred_region
          %249 = dma.done [#allocation6], 2048
        $region52: #{tpu_custom_call.1} parent=39 // pred_fallthru
          _
        %s250 = sand.u32 %s31, 1
        %s251 = scalar_lea.sflag [#allocation3], %s250
        %s252 = sand.u32 %s31, 1
        %s253 = smul.addr %s252, 32
        %s254 = scalar_lea.vmem [#allocation2], %s253
        %p255 = pneg %p44
        %p256 = pneg %p41
        %p257 = pneg %p65
        %p258 = pneg %p62
        %p259 = pneg %p86
        %p260 = pneg %p83
        %p261 = pneg %p107
        %p262 = pneg %p104
        %p263 = pneg %p128
        %p264 = pneg %p125
        %p265 = pneg %p154
        %p266 = pneg %p151
        %s267 = sand.u32 %s141, 1
        %s268 = scalar_lea.sflag [#allocation4], %s267
        %s269 = sand.u32 %s141, 1
        %s270 = smul.addr %s269, 32
        %s271 = scalar_lea.vmem [#allocation8], %s270
        %s272 = smul.u32 4, %s23
        %s273 = smul.u32 4, %s23
        %v275 = vld [vmem:[%s237] sm:$0xff]
        %v276 = vld [vmem:[%s237 + $0x8] sm:$0xff]
        %v277 = vld [vmem:[%s237 + $0x10] sm:$0xff]
        %v278 = vld [vmem:[%s237 + $0x18] sm:$0xff]
        %v279 = vpack.c.bf16 %v276, %v275
        %v280 = vpack.c.bf16 %v278, %v277
        %v281 = vld [vmem:[#allocation5] sm:$0xff]
        %v282 = vld [vmem:[#allocation5 + $0x8] sm:$0xff]
        %v283 = vld [vmem:[#allocation5 + $0x10] sm:$0xff]
        %v284 = vld [vmem:[#allocation5 + $0x18] sm:$0xff]
        %v285 = vld [vmem:[#allocation5 + $0x20] sm:$0xff]
        %v286 = vld [vmem:[#allocation5 + $0x28] sm:$0xff]
        %v287 = vld [vmem:[#allocation5 + $0x30] sm:$0xff]
        %v288 = vld [vmem:[#allocation5 + $0x38] sm:$0xff]
        %v289 = vld [vmem:[#allocation5 + $0x40] sm:$0xff]
        %v290 = vld [vmem:[#allocation5 + $0x48] sm:$0xff]
        %v291 = vld [vmem:[#allocation5 + $0x50] sm:$0xff]
        %v292 = vld [vmem:[#allocation5 + $0x58] sm:$0xff]
        %v293 = vld [vmem:[#allocation5 + $0x60] sm:$0xff]
        %v294 = vld [vmem:[#allocation5 + $0x68] sm:$0xff]
        %v295 = vld [vmem:[#allocation5 + $0x70] sm:$0xff]
        %v296 = vld [vmem:[#allocation5 + $0x78] sm:$0xff]
        %v297 = vld [vmem:[%s2] sm:$0x3]
        %v299 = vlaneseq
        %v300 = vshrl.u32 %v299, 7
        %v301 = vsub.s32 0, %v300
        %v302 = vrot.slane %v297, %v301
        %v303 = vlaneseq
        %v304 = vshrl.u32 %v303, 7
        %v305 = vsub.s32 1, %v304
        %v306 = vrot.slane %v297, %v305
        %v325 = vunpack.c.l.b16 %v281
        %v326 = vunpack.c.h.b16 %v281
        %v327 = vunpack.c.l.b16 %v282
        %v328 = vunpack.c.h.b16 %v282
        %v329 = vunpack.c.l.b16 %v283
        %v330 = vunpack.c.h.b16 %v283
        %v331 = vunpack.c.l.b16 %v284
        %v332 = vunpack.c.h.b16 %v284
        %v333 = vunpack.c.l.b16 %v285
        %v334 = vunpack.c.h.b16 %v285
        %v335 = vunpack.c.l.b16 %v286
        %v336 = vunpack.c.h.b16 %v286
        %v337 = vunpack.c.l.b16 %v287
        %v338 = vunpack.c.h.b16 %v287
        %v339 = vunpack.c.l.b16 %v288
        %v340 = vunpack.c.h.b16 %v288
        %v341 = vunpack.c.l.b16 %v289
        %v342 = vunpack.c.h.b16 %v289
        %v343 = vunpack.c.l.b16 %v290
        %v344 = vunpack.c.h.b16 %v290
        %v345 = vunpack.c.l.b16 %v291
        %v346 = vunpack.c.h.b16 %v291
        %v347 = vunpack.c.l.b16 %v292
        %v348 = vunpack.c.h.b16 %v292
        %v349 = vunpack.c.l.b16 %v293
        %v350 = vunpack.c.h.b16 %v293
        %v351 = vunpack.c.l.b16 %v294
        %v352 = vunpack.c.h.b16 %v294
        %v353 = vunpack.c.l.b16 %v295
        %v354 = vunpack.c.h.b16 %v295
        %v355 = vunpack.c.l.b16 %v296
        %v356 = vunpack.c.h.b16 %v296
        %v357 = vpack.c.b16 %v327, %v325
        %v358 = vpack.c.b16 %v328, %v326
        %v359 = vpack.c.b16 %v331, %v329
        %v360 = vpack.c.b16 %v332, %v330
        %v361 = vpack.c.b16 %v335, %v333
        %v362 = vpack.c.b16 %v336, %v334
        %v363 = vpack.c.b16 %v339, %v337
        %v364 = vpack.c.b16 %v340, %v338
        %v365 = vpack.c.b16 %v343, %v341
        %v366 = vpack.c.b16 %v344, %v342
        %v367 = vpack.c.b16 %v347, %v345
        %v368 = vpack.c.b16 %v348, %v346
        %v369 = vpack.c.b16 %v351, %v349
        %v370 = vpack.c.b16 %v352, %v350
        %v371 = vpack.c.b16 %v355, %v353
        %v372 = vpack.c.b16 %v356, %v354
        %389 = vmatprep.subr.bf16.mxu0 %v358
        %390 = vmatpush1.bf16.msra.mxu0 %v357
        %391 = vmatprep.subr.bf16.mxu0 %v360
        %392 = vmatpush1.bf16.msra.mxu0 %v359
        %393 = vmatprep.subr.bf16.mxu0 %v362
        %394 = vmatpush1.bf16.msra.mxu0 %v361
        %395 = vmatprep.subr.bf16.mxu0 %v364
        %396 = vmatpush1.bf16.msra.mxu0 %v363
        %397 = vmatprep.subr.bf16.mxu0 %v366
        %398 = vmatpush1.bf16.msra.mxu0 %v365
        %399 = vmatprep.subr.bf16.mxu0 %v368
        %400 = vmatpush1.bf16.msra.mxu0 %v367
        %401 = vmatprep.subr.bf16.mxu0 %v370
        %402 = vmatpush1.bf16.msra.mxu0 %v369
        %403 = vmatprep.subr.bf16.mxu0 %v372
        %404 = vmatpush1.bf16.msra.mxu0 %v371
        %405 = vmatprep.subr.bf16.mxu0 0
        %406 = vmatpush1.bf16.msra.mxu0 0
        %407 = vmatprep.subr.bf16.mxu0 0
        %408 = vmatpush1.bf16.msra.mxu0 0
        %409 = vmatprep.subr.bf16.mxu0 0
        %410 = vmatpush1.bf16.msra.mxu0 0
        %411 = vmatprep.subr.bf16.mxu0 0
        %412 = vmatpush1.bf16.msra.mxu0 0
        %413 = vmatprep.subr.bf16.mxu0 0
        %414 = vmatpush1.bf16.msra.mxu0 0
        %415 = vmatprep.subr.bf16.mxu0 0
        %416 = vmatpush1.bf16.msra.mxu0 0
        %417 = vmatprep.subr.bf16.mxu0 0
        %418 = vmatpush1.bf16.msra.mxu0 0
        %419 = vmatprep.subr.bf16.mxu0 0
        %420 = vmatpush1.bf16.msra.mxu0 0
        %421 = vmatprep.mubr.bf16.mxu0 0
        %422 = vmatmul.mubr.bf16.gmra.mrb[0].mxu0 %v279
        %v423 = vpop.f32.mrb[0].mxu0
        %v424 = vadd.f32 %v302, %v423
        %v425 = vpop.f32.mrb[0].mxu0
        %v426 = vadd.f32 %v306, %v425
        %v427 = vpop.f32.mrb[0].mxu0
        %v428 = vadd.f32 %v302, %v427
        %v429 = vpop.f32.mrb[0].mxu0
        %v430 = vadd.f32 %v306, %v429
        %431 = vmatprep.mubr.bf16.mxu0 0
        %432 = vmatmul.mubr.bf16.gmra.mrb[0].mxu0 %v280
        %v433 = vpop.f32.mrb[0].mxu0
        %v434 = vadd.f32 %v302, %v433
        %v435 = vpop.f32.mrb[0].mxu0
        %v436 = vadd.f32 %v306, %v435
        %v437 = vpop.f32.mrb[0].mxu0
        %v438 = vadd.f32 %v302, %v437
        %v439 = vpop.f32.mrb[0].mxu0
        %v440 = vadd.f32 %v306, %v439
        %441 = vdwg.mxu0
        %v442 = vmax.f32 %v424, 0.0
        %v443 = vmax.f32 %v426, 0.0
        %v444 = vmax.f32 %v428, 0.0
        %v445 = vmax.f32 %v430, 0.0
        %v446 = vmax.f32 %v434, 0.0
        %v447 = vmax.f32 %v436, 0.0
        %v448 = vmax.f32 %v438, 0.0
        %v449 = vmax.f32 %v440, 0.0
        %v450 = vpack.c.bf16 %v444, %v442
        %v451 = vpack.c.bf16 %v445, %v443
        %v452 = vpack.c.bf16 %v448, %v446
        %v453 = vpack.c.bf16 %v449, %v447
        %v454 = vld [vmem:[#allocation7] sm:$0xf]
        %v455 = vld [vmem:[#allocation7 + $0x4] sm:$0xf]
        %v456 = vld [vmem:[#allocation7 + $0x8] sm:$0xf]
        %v457 = vld [vmem:[#allocation7 + $0xc] sm:$0xf]
        %v458 = vld [vmem:[#allocation7 + $0x10] sm:$0xf]
        %v459 = vld [vmem:[#allocation7 + $0x14] sm:$0xf]
        %v460 = vld [vmem:[#allocation7 + $0x18] sm:$0xf]
        %v461 = vld [vmem:[#allocation7 + $0x1c] sm:$0xf]
        %v462 = vld [vmem:[#allocation7 + $0x20] sm:$0xf]
        %v463 = vld [vmem:[#allocation7 + $0x24] sm:$0xf]
        %v464 = vld [vmem:[#allocation7 + $0x28] sm:$0xf]
        %v465 = vld [vmem:[#allocation7 + $0x2c] sm:$0xf]
        %v466 = vld [vmem:[#allocation7 + $0x30] sm:$0xf]
        %v467 = vld [vmem:[#allocation7 + $0x34] sm:$0xf]
        %v468 = vld [vmem:[#allocation7 + $0x38] sm:$0xf]
        %v469 = vld [vmem:[#allocation7 + $0x3c] sm:$0xf]
        %v470 = vld [vmem:[#allocation7 + $0x40] sm:$0xf]
        %v471 = vld [vmem:[#allocation7 + $0x44] sm:$0xf]
        %v472 = vld [vmem:[#allocation7 + $0x48] sm:$0xf]
        %v473 = vld [vmem:[#allocation7 + $0x4c] sm:$0xf]
        %v474 = vld [vmem:[#allocation7 + $0x50] sm:$0xf]
        %v475 = vld [vmem:[#allocation7 + $0x54] sm:$0xf]
        %v476 = vld [vmem:[#allocation7 + $0x58] sm:$0xf]
        %v477 = vld [vmem:[#allocation7 + $0x5c] sm:$0xf]
        %v478 = vld [vmem:[#allocation7 + $0x60] sm:$0xf]
        %v479 = vld [vmem:[#allocation7 + $0x64] sm:$0xf]
        %v480 = vld [vmem:[#allocation7 + $0x68] sm:$0xf]
        %v481 = vld [vmem:[#allocation7 + $0x6c] sm:$0xf]
        %v482 = vld [vmem:[#allocation7 + $0x70] sm:$0xf]
        %v483 = vld [vmem:[#allocation7 + $0x74] sm:$0xf]
        %v484 = vld [vmem:[#allocation7 + $0x78] sm:$0xf]
        %v485 = vld [vmem:[#allocation7 + $0x7c] sm:$0xf]
        %v486 = vld [vmem:[%s4] sm:$0x1]
        %v488 = vlaneseq
        %v489 = vshrl.u32 %v488, 7
        %v490 = vsub.s32 0, %v489
        %v491 = vrot.slane %v486, %v490
        %v525 = vunpack.c.l.b16 %v454
        %v526 = vunpack.c.l.b16 %v455
        %v527 = vunpack.c.l.b16 %v456
        %v528 = vunpack.c.l.b16 %v457
        %v529 = vunpack.c.l.b16 %v458
        %v530 = vunpack.c.l.b16 %v459
        %v531 = vunpack.c.l.b16 %v460
        %v532 = vunpack.c.l.b16 %v461
        %v533 = vunpack.c.l.b16 %v462
        %v534 = vunpack.c.l.b16 %v463
        %v535 = vunpack.c.l.b16 %v464
        %v536 = vunpack.c.l.b16 %v465
        %v537 = vunpack.c.l.b16 %v466
        %v538 = vunpack.c.l.b16 %v467
        %v539 = vunpack.c.l.b16 %v468
        %v540 = vunpack.c.l.b16 %v469
        %v541 = vunpack.c.l.b16 %v470
        %v542 = vunpack.c.l.b16 %v471
        %v543 = vunpack.c.l.b16 %v472
        %v544 = vunpack.c.l.b16 %v473
        %v545 = vunpack.c.l.b16 %v474
        %v546 = vunpack.c.l.b16 %v475
        %v547 = vunpack.c.l.b16 %v476
        %v548 = vunpack.c.l.b16 %v477
        %v549 = vunpack.c.l.b16 %v478
        %v550 = vunpack.c.l.b16 %v479
        %v551 = vunpack.c.l.b16 %v480
        %v552 = vunpack.c.l.b16 %v481
        %v553 = vunpack.c.l.b16 %v482
        %v554 = vunpack.c.l.b16 %v483
        %v555 = vunpack.c.l.b16 %v484
        %v556 = vunpack.c.l.b16 %v485
        %v557 = vpack.c.b16 %v526, %v525
        %v558 = vpack.c.b16 %v528, %v527
        %v559 = vpack.c.b16 %v530, %v529
        %v560 = vpack.c.b16 %v532, %v531
        %v561 = vpack.c.b16 %v534, %v533
        %v562 = vpack.c.b16 %v536, %v535
        %v563 = vpack.c.b16 %v538, %v537
        %v564 = vpack.c.b16 %v540, %v539
        %v565 = vpack.c.b16 %v542, %v541
        %v566 = vpack.c.b16 %v544, %v543
        %v567 = vpack.c.b16 %v546, %v545
        %v568 = vpack.c.b16 %v548, %v547
        %v569 = vpack.c.b16 %v550, %v549
        %v570 = vpack.c.b16 %v552, %v551
        %v571 = vpack.c.b16 %v554, %v553
        %v572 = vpack.c.b16 %v556, %v555
        %589 = vmatprep.subr.bf16.mxu0 0
        %590 = vmatpush1.bf16.msra.mxu0 %v557
        %591 = vmatprep.subr.bf16.mxu0 0
        %592 = vmatpush1.bf16.msra.mxu0 %v558
        %593 = vmatprep.subr.bf16.mxu0 0
        %594 = vmatpush1.bf16.msra.mxu0 %v559
        %595 = vmatprep.subr.bf16.mxu0 0
        %596 = vmatpush1.bf16.msra.mxu0 %v560
        %597 = vmatprep.subr.bf16.mxu0 0
        %598 = vmatpush1.bf16.msra.mxu0 %v561
        %599 = vmatprep.subr.bf16.mxu0 0
        %600 = vmatpush1.bf16.msra.mxu0 %v562
        %601 = vmatprep.subr.bf16.mxu0 0
        %602 = vmatpush1.bf16.msra.mxu0 %v563
        %603 = vmatprep.subr.bf16.mxu0 0
        %604 = vmatpush1.bf16.msra.mxu0 %v564
        %605 = vmatprep.subr.bf16.mxu0 0
        %606 = vmatpush1.bf16.msra.mxu0 %v565
        %607 = vmatprep.subr.bf16.mxu0 0
        %608 = vmatpush1.bf16.msra.mxu0 %v566
        %609 = vmatprep.subr.bf16.mxu0 0
        %610 = vmatpush1.bf16.msra.mxu0 %v567
        %611 = vmatprep.subr.bf16.mxu0 0
        %612 = vmatpush1.bf16.msra.mxu0 %v568
        %613 = vmatprep.subr.bf16.mxu0 0
        %614 = vmatpush1.bf16.msra.mxu0 %v569
        %615 = vmatprep.subr.bf16.mxu0 0
        %616 = vmatpush1.bf16.msra.mxu0 %v570
        %617 = vmatprep.subr.bf16.mxu0 0
        %618 = vmatpush1.bf16.msra.mxu0 %v571
        %619 = vmatprep.subr.bf16.mxu0 0
        %620 = vmatpush1.bf16.msra.mxu0 %v572
        %621 = vmatprep.mubr.bf16.mxu0 %v451
        %622 = vmatmul.mubr.bf16.gmra.mrb[0].mxu0 %v450
        %v623 = vpop.f32.mrb[0].mxu0
        %v624 = vadd.f32 %v491, %v623
        %v625 = vpop.f32.mrb[0].mxu0
        %v626 = vpop.f32.mrb[0].mxu0
        %v627 = vadd.f32 %v491, %v626
        %v628 = vpop.f32.mrb[0].mxu0
        %629 = vmatprep.mubr.bf16.mxu0 %v453
        %630 = vmatmul.mubr.bf16.gmra.mrb[0].mxu0 %v452
        %v631 = vpop.f32.mrb[0].mxu0
        %v632 = vadd.f32 %v491, %v631
        %v633 = vpop.f32.mrb[0].mxu0
        %v634 = vpop.f32.mrb[0].mxu0
        %v635 = vadd.f32 %v491, %v634
        %v636 = vpop.f32.mrb[0].mxu0
        %637 = vdwg.mxu0
        %638 = vst [vmem:[%s271] sm:$0xff] %v624
        %639 = vst [vmem:[%s271 + $0x8] sm:$0xff] %v627
        %640 = vst [vmem:[%s271 + $0x10] sm:$0xff] %v632
        %641 = vst [vmem:[%s271 + $0x18] sm:$0xff] %v635
        %s642 = sand.u32 %s141, 1
        %s643 = scalar_lea.sflag [#allocation4], %s642
        %s644 = sand.u32 %s141, 1
        %s645 = smul.addr %s644, 32
        %s646 = scalar_lea.vmem [#allocation8], %s645
        // Predicated region
        $region53: #{tpu_custom_call.1} parent=39 // pred_check
          %p647 = pneg %p151
        $region54: #{tpu_custom_call.1} parent=39 // pred_check_branch
          %649 = sbr.rel (%p647) target = $region56
        $region55: #{tpu_custom_call.1} parent=39 // pred_region
          %s650 = smul.u32 4, %s23
          %s652 = ssub.s32 512, 512
          %653 = vsyncadd %s643, %s652
          %s654 = smul.addr %s650, 128
          %s655 = scalar_lea.hbm %s5, %s654
          %s656 = sshll.u32 %s646, 4
          %s657 = int_to_ptr.vmem [resolvable:$true] %s656
          %662 = dma.vmem_to_hbm [thread:$0]  %s657, 512, %s655, %s643, 128, 128, 8
        $region56: #{tpu_custom_call.1} parent=39 // pred_fallthru
          _
      $region40: #{tpu_custom_call.1} parent=5 // pred_fallthru
        _
      %p663 = scmp.le.s32.totalorder 2, %s18
      // Predicated region
      $region57: #{tpu_custom_call.1} parent=5 // pred_check
        %p664 = pneg %p663
      $region58: #{tpu_custom_call.1} parent=5 // pred_check_branch
        %666 = sbr.rel (%p664) target = $region60
      $region59: #{tpu_custom_call.1} parent=5 // pred_region
        %s667 = ssub.s32 %s18, 2
        // Predicated region
        $region61: #{tpu_custom_call.1} parent=59 // pred_check
          %p668 = pneg %p157
        $region62: #{tpu_custom_call.1} parent=59 // pred_check_branch
          %670 = sbr.rel (%p668) target = $region64
        $region63: #{tpu_custom_call.1} parent=59 // pred_region
          %s671 = sand.u32 %s142, 1
          %s672 = scalar_lea.sflag [#allocation4], %s671
          %s673 = sand.u32 %s142, 1
          %s674 = smul.addr %s673, 32
          %s675 = scalar_lea.vmem [#allocation8], %s674
          %676 = dma.done %s672, 512
        $region64: #{tpu_custom_call.1} parent=59 // pred_fallthru
          _
      $region60: #{tpu_custom_call.1} parent=5 // pred_fallthru
        _
    $region6: #{tpu_custom_call.1} parent=1 // loop_footer
      %s22 = sadd.s32 1, %s18
    $region7: #{tpu_custom_call.1} parent=1 // loop_footer_branch
      %17 = sbr.rel target = $region3
    $region8: #{tpu_custom_call.1} parent=1 // loop_exit
      _
    %677 = vsyncpa [#allocation3], 1
    %s678 = scalar_lea.sflag [#allocation3], 1
    %679 = vsyncpa %s678, 1
    %680 = vsyncpa [#allocation6], 1
    %681 = vsyncpa [#allocation4], 1
    %s682 = scalar_lea.sflag [#allocation4], 1
    %683 = vsyncpa %s682, 1

</llo_original>
